<compile_context>
chip_gen: v5e
topology: v5e:2x2
jax: 0.10.0
libtpu: 0.0.40
codegen_flags: <defaults>
</compile_context>

<pallas_src>
import functools

import jax
import jax.numpy as jnp
from jax.experimental import pallas as pl
from jax.experimental.pallas import tpu as pltpu


def _round_up(x, m):
    return (x + m - 1) // m * m


# -----------------------------------------------------------------------------
# Pallas kernel 1: Conv1d + bias + ReLU in native NCL layout (L on the lane axis)
# -----------------------------------------------------------------------------
def _mobileone_kernel(x_ref, w_ref, b_ref, o_ref):
    # x_ref: (1, stride, 1, C_in, TL + H)  bf16 phase-split input tile (+ halo)
    # w_ref: (K, C_out, C_in)              bf16 per-tap weights
    # b_ref: (C_out, 1)                    f32 bias (broadcast over L)
    # o_ref: (1, C_out, TL)                lane-dense output tile
    K = w_ref.shape[0]
    stride = x_ref.shape[1]
    C_out, TL = o_ref.shape[1], o_ref.shape[2]

    # Fold the bias into the accumulator init (saves one (C_out, TL) VPU add).
    acc = jnp.broadcast_to(b_ref[...], (C_out, TL)).astype(jnp.float32)
    for k in range(K):                                # K small & static -> unrolled
        p, s = k % stride, k // stride
        xk = x_ref[0, p, 0, :, s:s + TL]              # (C_in, TL) static slice
        acc = acc + jnp.dot(w_ref[k], xk, preferred_element_type=jnp.float32)
    o_ref[0] = jnp.maximum(acc, 0.0).astype(o_ref.dtype)


@functools.partial(jax.jit, static_argnames=("stride", "pad"))
def mobileone_block(x, weight, bias, *, stride: int, pad: int):
    """x: (N, C_in, L), weight: (C_out, C_in, K), bias: (C_out,) -> (N, C_out, L_out)."""
    N, C_in, L = x.shape
    C_out, _, K = weight.shape
    L_out = (L + 2 * pad - K) // stride + 1

    # --- L tiling: lane-dense tiles, up to 512 wide, padded to a multiple of 128 ---
    TL_MAX = 512
    L_out_p = _round_up(L_out, 128)
    if L_out_p <= TL_MAX:
        TL = L_out_p
    else:
        TL = TL_MAX
        L_out_p = _round_up(L_out, TL)
    n_lt = L_out_p // TL

    # --- glue: zero pad, polyphase split over `stride`, per-tile halo windows ---
    H = (K - 1 + stride - 1) // stride            # halo columns needed per tile
    L_ph = L_out_p + H                            # per-phase length
    x_bf = x.astype(jnp.bfloat16)
    x_pad = jnp.pad(x_bf, ((0, 0), (0, 0), (pad, pad)))
    target_len = stride * L_ph
    extra = max(0, target_len - x_pad.shape[-1])
    x_pad = jnp.pad(x_pad, ((0, 0), (0, 0), (0, extra)))
    # phases[n, p, c, i] = x_padded[n, c, i*stride + p]
    phases = x_pad.reshape(N, C_in, L_ph, stride).transpose(0, 3, 1, 2)
    # windows[n, p, j, c, :] = phases[n, p, c, j*TL : j*TL + TL + H]
    windows = jnp.stack(
        [phases[:, :, :, j * TL: j * TL + TL + H] for j in range(n_lt)], axis=2)

    w_taps = jnp.transpose(weight, (2, 0, 1)).astype(jnp.bfloat16)    # (K, C_out, C_in)
    b_col = bias.reshape(C_out, 1).astype(jnp.float32)

    out = pl.pallas_call(
        _mobileone_kernel,
        out_shape=jax.ShapeDtypeStruct((N, C_out, L_out_p), x.dtype),
        grid_spec=pltpu.PrefetchScalarGridSpec(
            num_scalar_prefetch=0,
            grid=(N, n_lt),
            in_specs=[
                pl.BlockSpec((1, stride, 1, C_in, TL + H),
                             lambda n, j: (n, 0, j, 0, 0)),
                pl.BlockSpec((K, C_out, C_in), lambda n, j: (0, 0, 0)),
                pl.BlockSpec((C_out, 1), lambda n, j: (0, 0)),
            ],
            out_specs=pl.BlockSpec((1, C_out, TL), lambda n, j: (n, 0, j)),
        ),
        compiler_params=pltpu.CompilerParams(
            dimension_semantics=("parallel", "parallel"),
            vmem_limit_bytes=32 * 1024 * 1024,
        ),
    )(windows, w_taps, b_col)

    return out[:, :, :L_out]


# -----------------------------------------------------------------------------
# Pallas kernel 2: LSTM recurrence (state + W_hh resident in VMEM, pl.loop over time)
# -----------------------------------------------------------------------------
def _lstm_kernel(hid, t_total, t_tile, xp_ref, whh_ref, h0_ref, c0_ref,
                 hseq_ref, hn_ref, cn_ref, h_sc, c_sc):
    # xp_ref:  (t_tile, 4*hid) f32  -- x @ W_ih^T + b_ih + b_hh (precomputed, this tile)
    # whh_ref: (hid, 4*hid)    f32  -- W_hh^T
    # h0/c0:   (1, hid)        f32  -- initial state
    # hseq_ref:(t_tile, hid)        -- per-step hidden outputs (this tile)
    # hn/cn:   (1, hid)             -- final state (written at last grid step)
    # h_sc/c_sc: VMEM scratch carrying the state across grid steps.
    j = pl.program_id(0)

    @pl.when(j == 0)
    def _():
        h_sc[...] = h0_ref[...]
        c_sc[...] = c0_ref[...]

    steps = jnp.minimum(t_tile, t_total - j * t_tile)   # valid rows in this tile

    @pl.loop(0, steps)
    def _(t):
        h = h_sc[...]
        c = c_sc[...]
        gates = xp_ref[pl.ds(t, 1), :] + jnp.dot(
            h, whh_ref[...], preferred_element_type=jnp.float32)
        i_g = jax.nn.sigmoid(gates[:, 0 * hid:1 * hid])      # torch gate order i,f,g,o
        f_g = jax.nn.sigmoid(gates[:, 1 * hid:2 * hid])
        g_g = jnp.tanh(gates[:, 2 * hid:3 * hid])
        o_g = jax.nn.sigmoid(gates[:, 3 * hid:4 * hid])
        c_new = f_g * c + i_g * g_g
        h_new = o_g * jnp.tanh(c_new)
        hseq_ref[pl.ds(t, 1), :] = h_new
        h_sc[...] = h_new
        c_sc[...] = c_new

    @pl.when(j == pl.num_programs(0) - 1)
    def _():
        hn_ref[...] = h_sc[...]
        cn_ref[...] = c_sc[...]


@functools.partial(jax.jit, static_argnames=("t_tile",))
def lstm_pallas(seq, w_ih, w_hh, b_ih, b_hh, h0, c0, *, t_tile: int = 512):
    """seq: (T, hid), w_*: (4*hid, hid), b_*: (4*hid,), h0/c0: (hid,)."""
    T, _ = seq.shape
    hid = h0.shape[-1]

    # One big input projection outside the recurrence (single MXU-friendly matmul).
    xp = (seq.astype(jnp.float32) @ w_ih.T.astype(jnp.float32)
          + (b_ih + b_hh).astype(jnp.float32))                     # (T, 4*hid)

    tt = min(t_tile, _round_up(T, 8))
    T_pad = _round_up(T, tt)
    xp = jnp.pad(xp, ((0, T_pad - T), (0, 0)))
    n_tt = T_pad // tt

    whh_t = w_hh.T.astype(jnp.float32)                             # (hid, 4*hid)
    h0_r = h0.reshape(1, hid).astype(jnp.float32)
    c0_r = c0.reshape(1, hid).astype(jnp.float32)

    kernel = functools.partial(_lstm_kernel, hid, T, tt)
    hseq, hn, cn = pl.pallas_call(
        kernel,
        out_shape=(jax.ShapeDtypeStruct((T_pad, hid), jnp.float32),
                   jax.ShapeDtypeStruct((1, hid), jnp.float32),
                   jax.ShapeDtypeStruct((1, hid), jnp.float32)),
        grid_spec=pltpu.PrefetchScalarGridSpec(
            num_scalar_prefetch=0,
            grid=(n_tt,),
            in_specs=[
                pl.BlockSpec((tt, 4 * hid), lambda j: (j, 0)),
                pl.BlockSpec((hid, 4 * hid), lambda j: (0, 0)),
                pl.BlockSpec((1, hid), lambda j: (0, 0)),
                pl.BlockSpec((1, hid), lambda j: (0, 0)),
            ],
            out_specs=[
                pl.BlockSpec((tt, hid), lambda j: (j, 0)),
                pl.BlockSpec((1, hid), lambda j: (0, 0)),
                pl.BlockSpec((1, hid), lambda j: (0, 0)),
            ],
            scratch_shapes=[pltpu.VMEM((1, hid), jnp.float32),
                            pltpu.VMEM((1, hid), jnp.float32)],
        ),
        compiler_params=pltpu.CompilerParams(
            dimension_semantics=("arbitrary",),
            vmem_limit_bytes=32 * 1024 * 1024,
        ),
    )(xp, whh_t, h0_r, c0_r)

    return hseq[:T], hn[0], cn[0]


# -----------------------------------------------------------------------------
# Pure-JAX references (used for correctness checks / reference forward path)
# -----------------------------------------------------------------------------
def _conv_relu_reference(x, weight, bias, *, stride: int, pad: int):
    xb = x.astype(jnp.bfloat16).astype(jnp.float32)
    wb = weight.astype(jnp.bfloat16).astype(jnp.float32)
    out = jax.lax.conv_general_dilated(
        xb, wb, window_strides=(stride,), padding=[(pad, pad)],
        dimension_numbers=("NCH", "OIH", "NCH"))
    return jnp.maximum(out + bias[None, :, None].astype(jnp.float32), 0.0)


def _lstm_reference(seq, w_ih, w_hh, b_ih, b_hh, h0, c0):
    def step(carry, x_t):
        h_t, c_t = carry
        gates = x_t @ w_ih.T + h_t @ w_hh.T + b_ih + b_hh      # torch gate order i,f,g,o
        i, f, g, o = jnp.split(gates, 4)
        c_n = jax.nn.sigmoid(f) * c_t + jax.nn.sigmoid(i) * jnp.tanh(g)
        h_n = jax.nn.sigmoid(o) * jnp.tanh(c_n)
        return (h_n, c_n), h_n

    (h_n, c_n), hseq = jax.lax.scan(step, (h0, c0), seq)
    return hseq, h_n, c_n


# -----------------------------------------------------------------------------
# Full Silero_Vad_5-style forward (STFT-mag -> encoder (Pallas) -> LSTM (Pallas) -> head)
# TODO(synk): STFT-magnitude conv and the 1x1-conv/sigmoid decoder head are tiny and kept
# as plain-JAX ops; the encoder convs and the LSTM recurrence are Pallas kernels.
# -----------------------------------------------------------------------------
ENCODER_SHAPES = [((128, 129, 3), 1, 1), ((64, 128, 3), 2, 1),
                  ((64, 64, 3), 2, 1), ((128, 64, 3), 1, 1)]


def init_params(key):
    ks = jax.random.split(key, 16)
    params = {}
    params["stft_basis"] = 0.05 * jax.random.normal(ks[0], (258, 1, 256), jnp.float32)
    enc = []
    i = 1
    for (co, ci, kk), st, pd in ENCODER_SHAPES:
        bound = 1.0 / float(ci * kk) ** 0.5
        w = jax.random.uniform(ks[i], (co, ci, kk), jnp.float32, -bound, bound)
        b = jax.random.uniform(ks[i + 1], (co,), jnp.float32, -bound, bound)
        enc.append((w, b, st, pd))
        i += 2
    params["encoder"] = enc
    hid = 128
    bound = 1.0 / hid ** 0.5
    params["lstm"] = (
        jax.random.uniform(ks[i + 0], (4 * hid, hid), jnp.float32, -bound, bound),   # W_ih
        jax.random.uniform(ks[i + 1], (4 * hid, hid), jnp.float32, -bound, bound),   # W_hh
        jax.random.uniform(ks[i + 2], (4 * hid,), jnp.float32, -bound, bound),       # b_ih
        jax.random.uniform(ks[i + 3], (4 * hid,), jnp.float32, -bound, bound),       # b_hh
    )
    params["decoder"] = (
        jax.random.uniform(ks[i + 4], (hid,), jnp.float32, -bound, bound),           # 1x1 conv w
        jax.random.uniform(ks[i + 5], (), jnp.float32, -bound, bound),               # 1x1 conv b
    )
    return params


def silero_vad_forward(params, audio, h, c,
                       conv_fn=mobileone_block, lstm_fn=lstm_pallas):
    n_fft, hop, to_pad = 256, 128, 64
    # STFT_conv2: reflect-pad right, conv1d with the forward basis, magnitude
    x = jnp.pad(audio, ((0, 0), (0, to_pad)), mode="reflect")[:, None, :]
    spec = jax.lax.conv_general_dilated(
        x, params["stft_basis"], window_strides=(hop,), padding=[(0, 0)],
        dimension_numbers=("NCH", "OIH", "NCH"))
    cutoff = n_fft // 2 + 1
    real, imag = spec[:, :cutoff, :], spec[:, cutoff:, :]
    feat = jnp.sqrt(real * real + imag * imag)               # (B, 129, F)
    # `normalized = spect` in the reference forward (normalization bypassed)

    for (w, b, st, pd) in params["encoder"]:
        feat = conv_fn(feat, w, b, stride=st, pad=pd)        # (B, 128, S)

    enc_t = jnp.transpose(feat, (0, 2, 1))                   # (B, S, 128)
    B, S, Fdim = enc_t.shape
    seq = enc_t.reshape(B * S, Fdim)                         # lstm_minibatched: one long seq

    w_ih, w_hh, b_ih, b_hh = params["lstm"]
    lstm_seq, h_n, c_n = lstm_fn(seq, w_ih, w_hh, b_ih, b_hh, h[0, 0], c[0, 0])
    lstm_out = lstm_seq.reshape(B, S, Fdim)

    dec_w, dec_b = params["decoder"]
    act = jnp.maximum(lstm_out, 0.0)                         # Dropout is identity in eval
    prob = jax.nn.sigmoid(jnp.einsum("bsf,f->bs", act, dec_w) + dec_b)
    out = jnp.mean(prob, axis=1, keepdims=True)              # (B, 1)
    return out, h_n[None, None, :], c_n[None, None, :]


if __name__ == "__main__":
    key = jax.random.PRNGKey(0)

    # --- 1) per-block correctness of the Pallas conv+ReLU kernel vs lax.conv ---
    test_cfgs = [
        (128, 129, 3, 1, 1, 2, 31),   # encoder layer 0
        (64, 128, 3, 2, 1, 2, 31),    # encoder layer 1 (stride 2)
        (64, 64, 3, 2, 1, 2, 16),     # encoder layer 2 (stride 2)
        (128, 64, 3, 1, 1, 2, 8),     # encoder layer 3
        (16, 8, 3, 2, 1, 2, 1500),    # multi L-tile path (two 512-wide tiles)
    ]
    for idx, (co, ci, kk, st, pd, n, L) in enumerate(test_cfgs):
        k1, k2, k3, key = jax.random.split(key, 4)
        xx = jax.random.normal(k1, (n, ci, L), jnp.float32)
        bound = 1.0 / float(ci * kk) ** 0.5
        ww = jax.random.uniform(k2, (co, ci, kk), jnp.float32, -bound, bound)
        bb = jax.random.uniform(k3, (co,), jnp.float32, -bound, bound)
        got = mobileone_block(xx, ww, bb, stride=st, pad=pd)
        ref = _conv_relu_reference(xx, ww, bb, stride=st, pad=pd)
        got = jax.block_until_ready(got)
        assert got.shape == ref.shape, (idx, got.shape, ref.shape)
        err = float(jnp.max(jnp.abs(got - ref)))
        assert jnp.allclose(got, ref, atol=2e-3, rtol=2e-3), (idx, err)

    # --- 2) Pallas LSTM recurrence vs lax.scan reference (multi-tile + partial tile) ---
    kx, kw1, kw2, kb1, kb2, kh, kc, key = jax.random.split(key, 8)
    T_l, hid = 700, 128
    seq = jax.random.normal(kx, (T_l, hid), jnp.float32)
    bound = 1.0 / hid ** 0.5
    w_ih = jax.random.uniform(kw1, (4 * hid, hid), jnp.float32, -bound, bound)
    w_hh = jax.random.uniform(kw2, (4 * hid, hid), jnp.float32, -bound, bound)
    b_ih = jax.random.uniform(kb1, (4 * hid,), jnp.float32, -bound, bound)
    b_hh = jax.random.uniform(kb2, (4 * hid,), jnp.float32, -bound, bound)
    h0v = 0.1 * jax.random.normal(kh, (hid,), jnp.float32)
    c0v = 0.1 * jax.random.normal(kc, (hid,), jnp.float32)
    hs_p, hn_p, cn_p = lstm_pallas(seq, w_ih, w_hh, b_ih, b_hh, h0v, c0v)
    hs_r, hn_r, cn_r = _lstm_reference(seq, w_ih, w_hh, b_ih, b_hh, h0v, c0v)
    hs_p = jax.block_until_ready(hs_p)
    assert hs_p.shape == hs_r.shape, (hs_p.shape, hs_r.shape)
    assert jnp.allclose(hs_p, hs_r, atol=2e-3, rtol=2e-3)
    assert jnp.allclose(hn_p, hn_r, atol=2e-3, rtol=2e-3)
    assert jnp.allclose(cn_p, cn_r, atol=2e-3, rtol=2e-3)

    # --- 3) full Silero-VAD-5-style forward with the Pallas encoder + Pallas LSTM ---
    params = init_params(jax.random.PRNGKey(0))
    B, T = 2, 4096                                   # -> 31 STFT frames, encoder seq = 8
    ka, key = jax.random.split(key)
    audio = 0.1 * jax.random.normal(ka, (B, T), jnp.float32)
    h0 = jnp.zeros((1, 1, 128), jnp.float32)
    c0 = jnp.zeros((1, 1, 128), jnp.float32)

    out, hn, cn = silero_vad_forward(params, audio, h0, c0)
    out, hn, cn = jax.block_until_ready((out, hn, cn))
    assert out.shape == (B, 1) and hn.shape == (1, 1, 128) and cn.shape == (1, 1, 128)
    assert bool(jnp.all(jnp.isfinite(out)))

    # end-to-end check against the pure-JAX path (lax.conv encoder + lax.scan LSTM)
    out_r, hn_r, cn_r = silero_vad_forward(params, audio, h0, c0,
                                           conv_fn=_conv_relu_reference,
                                           lstm_fn=_lstm_reference)
    assert jnp.allclose(out, out_r, atol=1e-3, rtol=1e-3)
    assert jnp.allclose(hn, hn_r, atol=1e-3, rtol=1e-3)
    assert jnp.allclose(cn, cn_r, atol=1e-3, rtol=1e-3)

    print("KERNEL_OK")
</pallas_src>

<mosaic_0001>
module attributes {stable_mosaic.version = 11 : i64} {
  func.func @_mobileone_kernel(%arg0: i32, %arg1: i32, %arg2: memref<1x1x1x129x130xbf16, #tpu.memory_space<vmem>>, %arg3: memref<3x128x129xbf16, #tpu.memory_space<vmem>>, %arg4: memref<128x1xf32, #tpu.memory_space<vmem>>, %arg5: memref<1x128x128xf32, #tpu.memory_space<vmem>>) attributes {dimension_semantics = [#tpu.dimension_semantics<parallel>, #tpu.dimension_semantics<parallel>], iteration_bounds = array<i64: 2, 1>, scalar_prefetch = 0 : i64, scratch_operands = 0 : i64, tpu.core_type = #tpu.core_type<tc>, window_params = [{transform_indices = @transform_0, window_bounds = array<i64: 1, 1, 1, 129, 130>}, {pipeline_mode = #tpu.pipeline_mode<synchronous>, transform_indices = @transform_1, window_bounds = array<i64: 3, 128, 129>}, {pipeline_mode = #tpu.pipeline_mode<synchronous>, transform_indices = @transform_2, window_bounds = array<i64: 128, 1>}, {transform_indices = @transform_3, window_bounds = array<i64: 1, 128, 128>}]} {
    %c0 = arith.constant 0 : index
    %c0_0 = arith.constant 0 : index
    %0 = vector.load %arg4[%c0, %c0_0] : memref<128x1xf32, #tpu.memory_space<vmem>>, vector<128x1xf32>
    %1 = vector.shape_cast %0 : vector<128x1xf32> to vector<128x1xf32>
    %2 = vector.broadcast %1 : vector<128x1xf32> to vector<128x128xf32>
    %c0_1 = arith.constant 0 : index
    %c0_2 = arith.constant 0 : index
    %c0_3 = arith.constant 0 : index
    %c0_4 = arith.constant 0 : index
    %c0_5 = arith.constant 0 : index
    %3 = vector.load %arg2[%c0_1, %c0_2, %c0_3, %c0_4, %c0_5] : memref<1x1x1x129x130xbf16, #tpu.memory_space<vmem>>, vector<1x1x1x129x128xbf16>
    %4 = vector.shape_cast %3 : vector<1x1x1x129x128xbf16> to vector<129x128xbf16>
    %c0_6 = arith.constant 0 : index
    %c0_7 = arith.constant 0 : index
    %c0_8 = arith.constant 0 : index
    %5 = vector.load %arg3[%c0_6, %c0_7, %c0_8] : memref<3x128x129xbf16, #tpu.memory_space<vmem>>, vector<1x128x129xbf16>
    %6 = vector.shape_cast %5 : vector<1x128x129xbf16> to vector<128x129xbf16>
    %cst = arith.constant dense<0.000000e+00> : vector<128x128xf32>
    %7 = tpu.matmul %6, %4, %cst {dimension_numbers = #tpu.dot_dimension_numbers<[1], [0], [0], [1], [0, 0, 1, 1], [], []>} : vector<128x129xbf16>, vector<129x128xbf16>, vector<128x128xf32> -> vector<128x128xf32>
    %8 = arith.addf %2, %7 : vector<128x128xf32>
    %c0_9 = arith.constant 0 : index
    %c0_10 = arith.constant 0 : index
    %c0_11 = arith.constant 0 : index
    %c0_12 = arith.constant 0 : index
    %c1 = arith.constant 1 : index
    %9 = vector.load %arg2[%c0_9, %c0_10, %c0_11, %c0_12, %c1] : memref<1x1x1x129x130xbf16, #tpu.memory_space<vmem>>, vector<1x1x1x129x128xbf16>
    %10 = vector.shape_cast %9 : vector<1x1x1x129x128xbf16> to vector<129x128xbf16>
    %c1_13 = arith.constant 1 : index
    %c0_14 = arith.constant 0 : index
    %c0_15 = arith.constant 0 : index
    %11 = vector.load %arg3[%c1_13, %c0_14, %c0_15] : memref<3x128x129xbf16, #tpu.memory_space<vmem>>, vector<1x128x129xbf16>
    %12 = vector.shape_cast %11 : vector<1x128x129xbf16> to vector<128x129xbf16>
    %cst_16 = arith.constant dense<0.000000e+00> : vector<128x128xf32>
    %13 = tpu.matmul %12, %10, %cst_16 {dimension_numbers = #tpu.dot_dimension_numbers<[1], [0], [0], [1], [0, 0, 1, 1], [], []>} : vector<128x129xbf16>, vector<129x128xbf16>, vector<128x128xf32> -> vector<128x128xf32>
    %14 = arith.addf %8, %13 : vector<128x128xf32>
    %c0_17 = arith.constant 0 : index
    %c0_18 = arith.constant 0 : index
    %c0_19 = arith.constant 0 : index
    %c0_20 = arith.constant 0 : index
    %c2 = arith.constant 2 : index
    %15 = vector.load %arg2[%c0_17, %c0_18, %c0_19, %c0_20, %c2] : memref<1x1x1x129x130xbf16, #tpu.memory_space<vmem>>, vector<1x1x1x129x128xbf16>
    %16 = vector.shape_cast %15 : vector<1x1x1x129x128xbf16> to vector<129x128xbf16>
    %c2_21 = arith.constant 2 : index
    %c0_22 = arith.constant 0 : index
    %c0_23 = arith.constant 0 : index
    %17 = vector.load %arg3[%c2_21, %c0_22, %c0_23] : memref<3x128x129xbf16, #tpu.memory_space<vmem>>, vector<1x128x129xbf16>
    %18 = vector.shape_cast %17 : vector<1x128x129xbf16> to vector<128x129xbf16>
    %cst_24 = arith.constant dense<0.000000e+00> : vector<128x128xf32>
    %19 = tpu.matmul %18, %16, %cst_24 {dimension_numbers = #tpu.dot_dimension_numbers<[1], [0], [0], [1], [0, 0, 1, 1], [], []>} : vector<128x129xbf16>, vector<129x128xbf16>, vector<128x128xf32> -> vector<128x128xf32>
    %20 = arith.addf %14, %19 : vector<128x128xf32>
    %cst_25 = arith.constant 0.000000e+00 : f32
    %21 = vector.broadcast %cst_25 : f32 to vector<128x128xf32>
    %22 = arith.maximumf %20, %21 : vector<128x128xf32>
    %c0_26 = arith.constant 0 : index
    %c0_27 = arith.constant 0 : index
    %c0_28 = arith.constant 0 : index
    %23 = vector.load %arg5[%c0_26, %c0_27, %c0_28] : memref<1x128x128xf32, #tpu.memory_space<vmem>>, vector<1x128x128xf32>
    %24 = vector.shape_cast %23 : vector<1x128x128xf32> to vector<128x128xf32>
    %25 = vector.shape_cast %22 : vector<128x128xf32> to vector<1x128x128xf32>
    tpu.vector_store %arg5[%c0_26, %c0_27, %c0_28], %25 {strides = array<i32>} : memref<1x128x128xf32, #tpu.memory_space<vmem>>, vector<1x128x128xf32>,
    return
  }
  func.func @transform_0(%arg0: i32, %arg1: i32) -> (i32, i32, i32, i32, i32) {
    %c0_i32 = arith.constant 0 : i32
    %c0_i32_0 = arith.constant 0 : i32
    %c0_i32_1 = arith.constant 0 : i32
    %c0_i32_2 = arith.constant 0 : i32
    return %arg0, %c0_i32, %arg1, %c0_i32_0, %c0_i32_1 : i32, i32, i32, i32, i32
  }
  func.func @transform_1(%arg0: i32, %arg1: i32) -> (i32, i32, i32) {
    %c0_i32 = arith.constant 0 : i32
    %c0_i32_0 = arith.constant 0 : i32
    %c0_i32_1 = arith.constant 0 : i32
    %c0_i32_2 = arith.constant 0 : i32
    return %c0_i32, %c0_i32_0, %c0_i32_1 : i32, i32, i32
  }
  func.func @transform_2(%arg0: i32, %arg1: i32) -> (i32, i32) {
    %c0_i32 = arith.constant 0 : i32
    %c0_i32_0 = arith.constant 0 : i32
    %c0_i32_1 = arith.constant 0 : i32
    return %c0_i32, %c0_i32_0 : i32, i32
  }
  func.func @transform_3(%arg0: i32, %arg1: i32) -> (i32, i32, i32) {
    %c0_i32 = arith.constant 0 : i32
    %c0_i32_0 = arith.constant 0 : i32
    return %arg0, %c0_i32, %arg1 : i32, i32, i32
  }
}

</mosaic_0001>

<llo_original>
// kernel: mobileone_block.1
$region0: #{mobileone_block.1}
  #allocation0 [shape = 'u32[]', space=smem, size = 0x4, offset = 0x4, fixed_abs, tag = 'smem constant byte address 0x4 - core index']
  #allocation1 [shape = 'u32[72,128]{1,0:T(1,128)}', space=vmem, size = 0x9000, scoped, tag = 'internal scratch']
  %s0 = inlined_call_operand.vmem [shape: bf16[2,1,1,129,130], index: 0, kind: input, shape index: {}]
  %s1 = inlined_call_operand.vmem [shape: bf16[3,128,129], index: 1, kind: input, shape index: {}]
  %s2 = inlined_call_operand.vmem [shape: f32[128,1], index: 2, kind: input, shape index: {}]
  %s3 = inlined_call_operand.vmem [shape: f32[2,128,128], index: 3, kind: output, shape index: {}]
  %s4 = sld [smem:[#allocation0]]
  $region45: #{mobileone_block.1} parent=0
    _
  %s6 = ssub.s32 1, %s4
  %s7 = scalar_select 0, %s6, %s4
  loop: start=0, step=1, limit=4
  $region2: #{mobileone_block.1} parent=0 // loop_pre_header
    _
  $region3: #{mobileone_block.1} parent=0 // loop_header
    %s9 = sphi 0, %s13
    %p10 = scmp.ge.s32.totalorder %s9, 4
    %s16 = sphi 0, %s28
    %s17 = sphi 0, %s24
    %s18 = sphi 0, %s16
    %s19 = sphi 0, %s17
    %s20 = sphi 0, %s18
    %s21 = sphi 0, %s19
    %s33 = sphi 0, %s35
    %s36 = sphi 0, %s33
    %s37 = sphi 0, %s36
    %s53 = sphi 0, %s37
    %s57 = sphi 0, %s57
    %s59 = sphi 0, %s57
    %s60 = sphi 0, %s59
    %s74 = sphi 0, %s60
    %s78 = sphi 0, %s78
    %s80 = sphi 0, %s78
    %s81 = sphi 0, %s80
    %s95 = sphi 0, %s81
    %s103 = sphi 0, %s105
    %s106 = sphi 0, %s103
    %s107 = sphi 0, %s106
    %s123 = sphi 0, %s107
  $region4: #{mobileone_block.1} parent=0 // loop_header_branch
    %12 = sbr.rel (%p10) target = $region8
  $region5: #{mobileone_block.1} parent=0 // loop_body
    %s14 = ssub.s32 %s9, 1
    %s15 = ssub.s32 %s9, 2
    %s22 = sadd.s32 1, %s17
    %p23 = scmp.ge.s32.totalorder %s22, 1
    %s24 = scalar_select %p23, 0, %s22
    %s25 = sadd.s32 1, %s16
    %s26 = scalar_select %p23, %s25, %s16
    %p27 = scmp.ge.s32.totalorder %s26, 2
    %s28 = scalar_select %p27, 0, %s26
    %s29 = ssub.s32 %s16, %s28
    %s30 = ssub.s32 %s17, %s24
    %s31 = sor.u32 %s29, %s30
    %p32 = scmp.eq.s32.totalorder %s31, 0
    %s34 = sadd.s32 %s33, 1
    %s35 = scalar_select %p32, %s33, %s34
    %p38 = pneg %p32
    %p39 = scmp.eq.s32.totalorder %s9, 1
    %p40 = por %p38, %p39
    %p41 = scmp.ne.s32.totalorder %s33, %s36
    %p42 = scmp.eq.s32.totalorder %s9, 0
    %p43 = por %p41, %p42
    %p44 = scmp.ne.s32.totalorder %s33, %s36
    %p45 = scmp.eq.s32.totalorder %s14, 1
    %p46 = por %p44, %p45
    %p47 = scmp.ne.s32.totalorder %s36, %s37
    %p48 = scmp.eq.s32.totalorder %s14, 0
    %p49 = por %p47, %p48
    %p50 = scmp.ne.s32.totalorder %s36, %s37
    %p51 = scmp.eq.s32.totalorder %s15, 1
    %p52 = por %p50, %p51
    %p54 = scmp.ne.s32.totalorder %s37, %s53
    %p55 = scmp.eq.s32.totalorder %s15, 0
    %p56 = por %p54, %p55
    %s58 = sadd.s32 %s57, 1
    %p61 = scmp.eq.s32.totalorder %s9, 1
    %p62 = scmp.ne.s32.totalorder %s57, %s59
    %p63 = scmp.eq.s32.totalorder %s9, 0
    %p64 = por %p62, %p63
    %p65 = scmp.ne.s32.totalorder %s57, %s59
    %p66 = scmp.eq.s32.totalorder %s14, 1
    %p67 = por %p65, %p66
    %p68 = scmp.ne.s32.totalorder %s59, %s60
    %p69 = scmp.eq.s32.totalorder %s14, 0
    %p70 = por %p68, %p69
    %p71 = scmp.ne.s32.totalorder %s59, %s60
    %p72 = scmp.eq.s32.totalorder %s15, 1
    %p73 = por %p71, %p72
    %p75 = scmp.ne.s32.totalorder %s60, %s74
    %p76 = scmp.eq.s32.totalorder %s15, 0
    %p77 = por %p75, %p76
    %s79 = sadd.s32 %s78, 1
    %p82 = scmp.eq.s32.totalorder %s9, 1
    %p83 = scmp.ne.s32.totalorder %s78, %s80
    %p84 = scmp.eq.s32.totalorder %s9, 0
    %p85 = por %p83, %p84
    %p86 = scmp.ne.s32.totalorder %s78, %s80
    %p87 = scmp.eq.s32.totalorder %s14, 1
    %p88 = por %p86, %p87
    %p89 = scmp.ne.s32.totalorder %s80, %s81
    %p90 = scmp.eq.s32.totalorder %s14, 0
    %p91 = por %p89, %p90
    %p92 = scmp.ne.s32.totalorder %s80, %s81
    %p93 = scmp.eq.s32.totalorder %s15, 1
    %p94 = por %p92, %p93
    %p96 = scmp.ne.s32.totalorder %s81, %s95
    %p97 = scmp.eq.s32.totalorder %s15, 0
    %p98 = por %p96, %p97
    %s99 = ssub.s32 %s16, %s28
    %s100 = ssub.s32 %s17, %s24
    %s101 = sor.u32 %s99, %s100
    %p102 = scmp.eq.s32.totalorder %s101, 0
    %s104 = sadd.s32 %s103, 1
    %s105 = scalar_select %p102, %s103, %s104
    %p108 = pneg %p102
    %p109 = scmp.eq.s32.totalorder %s9, 1
    %p110 = por %p108, %p109
    %p111 = scmp.ne.s32.totalorder %s103, %s106
    %p112 = scmp.eq.s32.totalorder %s9, 0
    %p113 = por %p111, %p112
    %p114 = scmp.ne.s32.totalorder %s103, %s106
    %p115 = scmp.eq.s32.totalorder %s14, 1
    %p116 = por %p114, %p115
    %p117 = scmp.ne.s32.totalorder %s106, %s107
    %p118 = scmp.eq.s32.totalorder %s14, 0
    %p119 = por %p117, %p118
    %p120 = scmp.ne.s32.totalorder %s106, %s107
    %p121 = scmp.eq.s32.totalorder %s15, 1
    %p122 = por %p120, %p121
    %p124 = scmp.ne.s32.totalorder %s107, %s123
    %p125 = scmp.eq.s32.totalorder %s15, 0
    %p126 = por %p124, %p125
    %p127 = scmp.le.s32.totalorder 1, %s9
    %p128 = scmp.lt.s32.totalorder %s9, 3
    %p129 = pnand %p127, %p128
    %p130 = pneg %p129
    // Predicated region
    $region9: #{mobileone_block.1} parent=5 // pred_check
      _
    $region10: #{mobileone_block.1} parent=5 // pred_check_branch
      %132 = sbr.rel (%p129) target = $region12
    $region11: #{mobileone_block.1} parent=5 // pred_region
      %s133 = ssub.s32 %s9, 1
      // Predicated region
      $region13: #{mobileone_block.1} parent=11 // pred_check
        %p134 = pneg %p70
      $region14: #{mobileone_block.1} parent=11 // pred_check_branch
        %136 = sbr.rel (%p134) target = $region16
      $region15: #{mobileone_block.1} parent=11 // pred_region
        _
      $region16: #{mobileone_block.1} parent=11 // pred_fallthru
        _
      // Predicated region
      $region17: #{mobileone_block.1} parent=11 // pred_check
        %p137 = pneg %p91
      $region18: #{mobileone_block.1} parent=11 // pred_check_branch
        %139 = sbr.rel (%p137) target = $region20
      $region19: #{mobileone_block.1} parent=11 // pred_region
        _
      $region20: #{mobileone_block.1} parent=11 // pred_fallthru
        _
    $region12: #{mobileone_block.1} parent=5 // pred_fallthru
      _
    %p140 = scmp.lt.s32.totalorder %s9, 2
    // Predicated region
    $region21: #{mobileone_block.1} parent=5 // pred_check
      %p141 = pneg %p140
    $region22: #{mobileone_block.1} parent=5 // pred_check_branch
      %143 = sbr.rel (%p141) target = $region24
    $region23: #{mobileone_block.1} parent=5 // pred_region
      // Predicated region
      $region25: #{mobileone_block.1} parent=23 // pred_check
        %p144 = pneg %p43
      $region26: #{mobileone_block.1} parent=23 // pred_check_branch
        %146 = sbr.rel (%p144) target = $region28
      $region27: #{mobileone_block.1} parent=23 // pred_region
        %p147 = scmp.lt.s32.totalorder %s16, 1
        %s148 = scalar_select %p147, %s16, 1
        %p149 = scmp.lt.s32.totalorder %s17, 0
        %s150 = scalar_select %p149, %s17, 0
        %s151 = smul.addr %s150, 34
        %s152 = smul.addr %s148, 34
        %s153 = sadd.s32 %s151, %s152
        %s154 = smul.addr %s153, 4
        %s155 = scalar_lea.vmem %s0, %s154
      $region28: #{mobileone_block.1} parent=23 // pred_fallthru
        _
    $region24: #{mobileone_block.1} parent=5 // pred_fallthru
      _
    %p156 = scmp.le.s32.totalorder 1, %s9
    %p157 = scmp.lt.s32.totalorder %s9, 3
    %p158 = pnand %p156, %p157
    %p159 = pneg %p158
    // Predicated region
    $region29: #{mobileone_block.1} parent=5 // pred_check
      _
    $region30: #{mobileone_block.1} parent=5 // pred_check_branch
      %161 = sbr.rel (%p158) target = $region32
    $region31: #{mobileone_block.1} parent=5 // pred_region
      %s162 = ssub.s32 %s9, 1
      %p163 = scmp.lt.s32.totalorder %s18, 1
      %s164 = scalar_select %p163, %s18, 1
      %p165 = scmp.lt.s32.totalorder %s19, 0
      %s166 = scalar_select %p165, %s19, 0
      %s167 = smul.addr %s166, 34
      %s168 = smul.addr %s164, 34
      %s169 = sadd.s32 %s167, %s168
      %s170 = smul.addr %s169, 4
      %s171 = scalar_lea.vmem %s0, %s170
      %p172 = pneg %p49
      %p173 = pneg %p46
      %p174 = pneg %p70
      %p175 = pneg %p67
      %p176 = pneg %p91
      %p177 = pneg %p88
      %p178 = pneg %p119
      %p179 = pneg %p116
      %p180 = scmp.lt.s32.totalorder %s18, 1
      %s181 = scalar_select %p180, %s18, 1
      %p182 = scmp.lt.s32.totalorder %s19, 0
      %s183 = scalar_select %p182, %s19, 0
      %s184 = smul.addr %s181, 16
      %s185 = sadd.s32 %s183, %s184
      %s186 = smul.addr %s185, 8
      %s187 = scalar_lea.vmem %s3, %s186
      %p188 = scmp.lt.s32.totalorder %s18, 1
      %s189 = scalar_select %p188, %s18, 1
      %p190 = scmp.lt.s32.totalorder %s19, 0
      %s191 = scalar_select %p190, %s19, 0
      %s192 = smul.addr %s191, 34
      %s193 = smul.addr %s189, 34
      %s194 = sadd.s32 %s192, %s193
      %s195 = smul.addr %s194, 4
      %s196 = scalar_lea.vmem %s0, %s195
      %p197 = scmp.lt.s32.totalorder %s18, 1
      %s198 = scalar_select %p197, %s18, 1
      %p199 = scmp.lt.s32.totalorder %s19, 0
      %s200 = scalar_select %p199, %s19, 0
      %s201 = smul.addr %s198, 16
      %s202 = sadd.s32 %s200, %s201
      %s203 = smul.addr %s202, 8
      %s204 = scalar_lea.vmem %s3, %s203
      %v206 = vld [vmem:[%s2] sm:$0xff]
      %v207 = vld [vmem:[%s2 + $0x8] sm:$0xff]
      %v208 = vld [vmem:[%s2 + $0x10] sm:$0xff]
      %v209 = vld [vmem:[%s2 + $0x18] sm:$0xff]
      %v210 = vld [vmem:[%s2 + $0x20] sm:$0xff]
      %v211 = vld [vmem:[%s2 + $0x28] sm:$0xff]
      %v212 = vld [vmem:[%s2 + $0x30] sm:$0xff]
      %v213 = vld [vmem:[%s2 + $0x38] sm:$0xff]
      %v214 = vld [vmem:[%s2 + $0x40] sm:$0xff]
      %v215 = vld [vmem:[%s2 + $0x48] sm:$0xff]
      %v216 = vld [vmem:[%s2 + $0x50] sm:$0xff]
      %v217 = vld [vmem:[%s2 + $0x58] sm:$0xff]
      %v218 = vld [vmem:[%s2 + $0x60] sm:$0xff]
      %v219 = vld [vmem:[%s2 + $0x68] sm:$0xff]
      %v220 = vld [vmem:[%s2 + $0x70] sm:$0xff]
      %v221 = vld [vmem:[%s2 + $0x78] sm:$0xff]
      %223 = vset.pattern.permute.xlu0 0
      %224 = vperm.xlu0 %223, %v206
      %v225 = vpop.permute.xlu0 %224
      %228 = vset.pattern.permute.xlu0 0
      %229 = vperm.xlu0 %228, %v207
      %v230 = vpop.permute.xlu0 %229
      %233 = vset.pattern.permute.xlu0 0
      %234 = vperm.xlu0 %233, %v208
      %v235 = vpop.permute.xlu0 %234
      %238 = vset.pattern.permute.xlu0 0
      %239 = vperm.xlu0 %238, %v209
      %v240 = vpop.permute.xlu0 %239
      %243 = vset.pattern.permute.xlu0 0
      %244 = vperm.xlu0 %243, %v210
      %v245 = vpop.permute.xlu0 %244
      %248 = vset.pattern.permute.xlu0 0
      %249 = vperm.xlu0 %248, %v211
      %v250 = vpop.permute.xlu0 %249
      %253 = vset.pattern.permute.xlu0 0
      %254 = vperm.xlu0 %253, %v212
      %v255 = vpop.permute.xlu0 %254
      %258 = vset.pattern.permute.xlu0 0
      %259 = vperm.xlu0 %258, %v213
      %v260 = vpop.permute.xlu0 %259
      %263 = vset.pattern.permute.xlu0 0
      %264 = vperm.xlu0 %263, %v214
      %v265 = vpop.permute.xlu0 %264
      %268 = vset.pattern.permute.xlu0 0
      %269 = vperm.xlu0 %268, %v215
      %v270 = vpop.permute.xlu0 %269
      %273 = vset.pattern.permute.xlu0 0
      %274 = vperm.xlu0 %273, %v216
      %v275 = vpop.permute.xlu0 %274
      %278 = vset.pattern.permute.xlu0 0
      %279 = vperm.xlu0 %278, %v217
      %v280 = vpop.permute.xlu0 %279
      %283 = vset.pattern.permute.xlu0 0
      %284 = vperm.xlu0 %283, %v218
      %v285 = vpop.permute.xlu0 %284
      %288 = vset.pattern.permute.xlu0 0
      %289 = vperm.xlu0 %288, %v219
      %v290 = vpop.permute.xlu0 %289
      %293 = vset.pattern.permute.xlu0 0
      %294 = vperm.xlu0 %293, %v220
      %v295 = vpop.permute.xlu0 %294
      %298 = vset.pattern.permute.xlu0 0
      %299 = vperm.xlu0 %298, %v221
      %v300 = vpop.permute.xlu0 %299
      %v302 = vld [vmem:[%s196] sm:$0xf]
      %v303 = vld [vmem:[%s196 + $0x8] sm:$0xf]
      %v304 = vld [vmem:[%s196 + $0x10] sm:$0xf]
      %v305 = vld [vmem:[%s196 + $0x18] sm:$0xf]
      %v306 = vld [vmem:[%s196 + $0x20] sm:$0xf]
      %v307 = vld [vmem:[%s196 + $0x28] sm:$0xf]
      %v308 = vld [vmem:[%s196 + $0x30] sm:$0xf]
      %v309 = vld [vmem:[%s196 + $0x38] sm:$0xf]
      %v310 = vld [vmem:[%s196 + $0x40] sm:$0xf]
      %v311 = vld [vmem:[%s196 + $0x48] sm:$0xf]
      %v312 = vld [vmem:[%s196 + $0x50] sm:$0xf]
      %v313 = vld [vmem:[%s196 + $0x58] sm:$0xf]
      %v314 = vld [vmem:[%s196 + $0x60] sm:$0xf]
      %v315 = vld [vmem:[%s196 + $0x68] sm:$0xf]
      %v316 = vld [vmem:[%s196 + $0x70] sm:$0xf]
      %v317 = vld [vmem:[%s196 + $0x78] sm:$0xf]
      %v318 = vld [vmem:[%s196 + $0x80] sm:$0x1]
      %v319 = vld [vmem:[%s1] sm:$0xff]
      %v320 = vld [vmem:[%s1 + $0x8] sm:$0xff]
      %v321 = vld [vmem:[%s1 + $0x10] sm:$0xff]
      %v322 = vld [vmem:[%s1 + $0x18] sm:$0xff]
      %v323 = vld [vmem:[%s1 + $0x20] sm:$0xff]
      %v324 = vld [vmem:[%s1 + $0x28] sm:$0xff]
      %v325 = vld [vmem:[%s1 + $0x30] sm:$0xff]
      %v326 = vld [vmem:[%s1 + $0x38] sm:$0xff]
      %v327 = vld [vmem:[%s1 + $0x40] sm:$0xff]
      %v328 = vld [vmem:[%s1 + $0x48] sm:$0xff]
      %v329 = vld [vmem:[%s1 + $0x50] sm:$0xff]
      %v330 = vld [vmem:[%s1 + $0x58] sm:$0xff]
      %v331 = vld [vmem:[%s1 + $0x60] sm:$0xff]
      %v332 = vld [vmem:[%s1 + $0x68] sm:$0xff]
      %v333 = vld [vmem:[%s1 + $0x70] sm:$0xff]
      %v334 = vld [vmem:[%s1 + $0x78] sm:$0xff]
      %v351 = vunpack.c.l.b16 %v319
      %v352 = vunpack.c.h.b16 %v319
      %v353 = vunpack.c.l.b16 %v320
      %v354 = vunpack.c.h.b16 %v320
      %v355 = vunpack.c.l.b16 %v321
      %v356 = vunpack.c.h.b16 %v321
      %v357 = vunpack.c.l.b16 %v322
      %v358 = vunpack.c.h.b16 %v322
      %v359 = vunpack.c.l.b16 %v323
      %v360 = vunpack.c.h.b16 %v323
      %v361 = vunpack.c.l.b16 %v324
      %v362 = vunpack.c.h.b16 %v324
      %v363 = vunpack.c.l.b16 %v325
      %v364 = vunpack.c.h.b16 %v325
      %v365 = vunpack.c.l.b16 %v326
      %v366 = vunpack.c.h.b16 %v326
      %v367 = vunpack.c.l.b16 %v327
      %v368 = vunpack.c.h.b16 %v327
      %v369 = vunpack.c.l.b16 %v328
      %v370 = vunpack.c.h.b16 %v328
      %v371 = vunpack.c.l.b16 %v329
      %v372 = vunpack.c.h.b16 %v329
      %v373 = vunpack.c.l.b16 %v330
      %v374 = vunpack.c.h.b16 %v330
      %v375 = vunpack.c.l.b16 %v331
      %v376 = vunpack.c.h.b16 %v331
      %v377 = vunpack.c.l.b16 %v332
      %v378 = vunpack.c.h.b16 %v332
      %v379 = vunpack.c.l.b16 %v333
      %v380 = vunpack.c.h.b16 %v333
      %v381 = vunpack.c.l.b16 %v334
      %v382 = vunpack.c.h.b16 %v334
      %v383 = vpack.c.b16 %v353, %v351
      %v384 = vpack.c.b16 %v354, %v352
      %v385 = vpack.c.b16 %v357, %v355
      %v386 = vpack.c.b16 %v358, %v356
      %v387 = vpack.c.b16 %v361, %v359
      %v388 = vpack.c.b16 %v362, %v360
      %v389 = vpack.c.b16 %v365, %v363
      %v390 = vpack.c.b16 %v366, %v364
      %v391 = vpack.c.b16 %v369, %v367
      %v392 = vpack.c.b16 %v370, %v368
      %v393 = vpack.c.b16 %v373, %v371
      %v394 = vpack.c.b16 %v374, %v372
      %v395 = vpack.c.b16 %v377, %v375
      %v396 = vpack.c.b16 %v378, %v376
      %v397 = vpack.c.b16 %v381, %v379
      %v398 = vpack.c.b16 %v382, %v380
      %v424 = vunpack.c.l.b16 %v302
      %v425 = vunpack.c.l.b16 %v303
      %v426 = vunpack.c.l.b16 %v304
      %v427 = vunpack.c.l.b16 %v305
      %v428 = vunpack.c.l.b16 %v306
      %v429 = vunpack.c.l.b16 %v307
      %v430 = vunpack.c.l.b16 %v308
      %v431 = vunpack.c.l.b16 %v309
      %v432 = vunpack.c.l.b16 %v310
      %v433 = vunpack.c.l.b16 %v311
      %v434 = vunpack.c.l.b16 %v312
      %v435 = vunpack.c.l.b16 %v313
      %v436 = vunpack.c.l.b16 %v314
      %v437 = vunpack.c.l.b16 %v315
      %v438 = vunpack.c.l.b16 %v316
      %v439 = vunpack.c.l.b16 %v317
      %v440 = vunpack.c.l.b16 %v318
      %v441 = vpack.c.b16 %v425, %v424
      %v442 = vpack.c.b16 %v427, %v426
      %v443 = vpack.c.b16 %v429, %v428
      %v444 = vpack.c.b16 %v431, %v430
      %v445 = vpack.c.b16 %v433, %v432
      %v446 = vpack.c.b16 %v435, %v434
      %v447 = vpack.c.b16 %v437, %v436
      %v448 = vpack.c.b16 %v439, %v438
      %v449 = vpack.c.b16 %v440, %v440
      %vm458 = vcmask 7168
      %v460 = vsel %vm458, %v384, 0
      %v463 = vsel %vm458, %v386, 0
      %v466 = vsel %vm458, %v388, 0
      %v469 = vsel %vm458, %v390, 0
      %v472 = vsel %vm458, %v392, 0
      %v475 = vsel %vm458, %v394, 0
      %v478 = vsel %vm458, %v396, 0
      %v481 = vsel %vm458, %v398, 0
      %vm483 = vcmask 1040384
      %v484 = vsel 0, 4294967295, 65535
      %v485 = vsel %vm483, %v484, 0
      %v487 = vand.u32 %v449, %v485
      %489 = vmatpush.bf16.msra.mxu0 %v448
      %490 = vmatpush.bf16.msra.mxu0 %v447
      %491 = vmatpush.bf16.msra.mxu0 %v446
      %492 = vmatpush.bf16.msra.mxu0 %v445
      %493 = vmatpush.bf16.msra.mxu0 %v444
      %494 = vmatpush.bf16.msra.mxu0 %v443
      %495 = vmatpush.bf16.msra.mxu0 %v442
      %496 = vmatpush.bf16.msra.mxu0 %v441
      %497 = vmatmul.bf16.gmra.mxu0 %v383
      %v498 = vpop.f32.mrf.mxu0
      %v499 = vadd.f32 0.0, %v498
      %v500 = vpop.f32.mrf.mxu0
      %v501 = vadd.f32 0.0, %v500
      %502 = vmatmul.bf16.gmra.mxu0 %v385
      %v503 = vpop.f32.mrf.mxu0
      %v504 = vadd.f32 0.0, %v503
      %v505 = vpop.f32.mrf.mxu0
      %v506 = vadd.f32 0.0, %v505
      %507 = vmatmul.bf16.gmra.mxu0 %v387
      %v508 = vpop.f32.mrf.mxu0
      %v509 = vadd.f32 0.0, %v508
      %v510 = vpop.f32.mrf.mxu0
      %v511 = vadd.f32 0.0, %v510
      %512 = vmatmul.bf16.gmra.mxu0 %v389
      %v513 = vpop.f32.mrf.mxu0
      %v514 = vadd.f32 0.0, %v513
      %v515 = vpop.f32.mrf.mxu0
      %v516 = vadd.f32 0.0, %v515
      %517 = vmatmul.bf16.gmra.mxu0 %v391
      %v518 = vpop.f32.mrf.mxu0
      %v519 = vadd.f32 0.0, %v518
      %v520 = vpop.f32.mrf.mxu0
      %v521 = vadd.f32 0.0, %v520
      %522 = vmatmul.bf16.gmra.mxu0 %v393
      %v523 = vpop.f32.mrf.mxu0
      %v524 = vadd.f32 0.0, %v523
      %v525 = vpop.f32.mrf.mxu0
      %v526 = vadd.f32 0.0, %v525
      %527 = vmatmul.bf16.gmra.mxu0 %v395
      %v528 = vpop.f32.mrf.mxu0
      %v529 = vadd.f32 0.0, %v528
      %v530 = vpop.f32.mrf.mxu0
      %v531 = vadd.f32 0.0, %v530
      %532 = vmatmul.bf16.gmra.mxu0 %v397
      %v533 = vpop.f32.mrf.mxu0
      %v534 = vadd.f32 0.0, %v533
      %v535 = vpop.f32.mrf.mxu0
      %v536 = vadd.f32 0.0, %v535
      %537 = vdwg.mxu0
      %538 = vmatpush.bf16.msra.mxu0 0
      %539 = vmatpush.bf16.msra.mxu0 0
      %540 = vmatpush.bf16.msra.mxu0 0
      %541 = vmatpush.bf16.msra.mxu0 0
      %542 = vmatpush.bf16.msra.mxu0 0
      %543 = vmatpush.bf16.msra.mxu0 0
      %544 = vmatpush.bf16.msra.mxu0 0
      %545 = vmatpush.bf16.msra.mxu0 %v487
      %546 = vmatmul.bf16.gmra.mxu0 %v460
      %v547 = vpop.f32.mrf.mxu0
      %v548 = vadd.f32 %v499, %v547
      %v549 = vpop.f32.mrf.mxu0
      %v550 = vadd.f32 %v501, %v549
      %551 = vmatmul.bf16.gmra.mxu0 %v463
      %v552 = vpop.f32.mrf.mxu0
      %v553 = vadd.f32 %v504, %v552
      %v554 = vpop.f32.mrf.mxu0
      %v555 = vadd.f32 %v506, %v554
      %556 = vmatmul.bf16.gmra.mxu0 %v466
      %v557 = vpop.f32.mrf.mxu0
      %v558 = vadd.f32 %v509, %v557
      %v559 = vpop.f32.mrf.mxu0
      %v560 = vadd.f32 %v511, %v559
      %561 = vmatmul.bf16.gmra.mxu0 %v469
      %v562 = vpop.f32.mrf.mxu0
      %v563 = vadd.f32 %v514, %v562
      %v564 = vpop.f32.mrf.mxu0
      %v565 = vadd.f32 %v516, %v564
      %566 = vmatmul.bf16.gmra.mxu0 %v472
      %v567 = vpop.f32.mrf.mxu0
      %v568 = vadd.f32 %v519, %v567
      %v569 = vpop.f32.mrf.mxu0
      %v570 = vadd.f32 %v521, %v569
      %571 = vmatmul.bf16.gmra.mxu0 %v475
      %v572 = vpop.f32.mrf.mxu0
      %v573 = vadd.f32 %v524, %v572
      %v574 = vpop.f32.mrf.mxu0
      %v575 = vadd.f32 %v526, %v574
      %576 = vmatmul.bf16.gmra.mxu0 %v478
      %v577 = vpop.f32.mrf.mxu0
      %v578 = vadd.f32 %v529, %v577
      %v579 = vpop.f32.mrf.mxu0
      %v580 = vadd.f32 %v531, %v579
      %581 = vmatmul.bf16.gmra.mxu0 %v481
      %v582 = vpop.f32.mrf.mxu0
      %v583 = vadd.f32 %v534, %v582
      %v584 = vpop.f32.mrf.mxu0
      %v585 = vadd.f32 %v536, %v584
      %586 = vdwg.mxu0
      %v587 = vadd.f32 %v225, %v548
      %v588 = vadd.f32 %v230, %v550
      %v589 = vadd.f32 %v235, %v553
      %v590 = vadd.f32 %v240, %v555
      %v591 = vadd.f32 %v245, %v558
      %v592 = vadd.f32 %v250, %v560
      %v593 = vadd.f32 %v255, %v563
      %v594 = vadd.f32 %v260, %v565
      %v595 = vadd.f32 %v265, %v568
      %v596 = vadd.f32 %v270, %v570
      %v597 = vadd.f32 %v275, %v573
      %v598 = vadd.f32 %v280, %v575
      %v599 = vadd.f32 %v285, %v578
      %v600 = vadd.f32 %v290, %v580
      %v601 = vadd.f32 %v295, %v583
      %v602 = vadd.f32 %v300, %v585
      %v603 = vld [vmem:[%s196] sm:$0xff]
      %v604 = vld [vmem:[%s196 + $0x8] sm:$0xff]
      %v605 = vld [vmem:[%s196 + $0x10] sm:$0xff]
      %v606 = vld [vmem:[%s196 + $0x18] sm:$0xff]
      %v607 = vld [vmem:[%s196 + $0x20] sm:$0xff]
      %v608 = vld [vmem:[%s196 + $0x28] sm:$0xff]
      %v609 = vld [vmem:[%s196 + $0x30] sm:$0xff]
      %v610 = vld [vmem:[%s196 + $0x38] sm:$0xff]
      %v611 = vld [vmem:[%s196 + $0x40] sm:$0xff]
      %v612 = vld [vmem:[%s196 + $0x48] sm:$0xff]
      %v613 = vld [vmem:[%s196 + $0x50] sm:$0xff]
      %v614 = vld [vmem:[%s196 + $0x58] sm:$0xff]
      %v615 = vld [vmem:[%s196 + $0x60] sm:$0xff]
      %v616 = vld [vmem:[%s196 + $0x68] sm:$0xff]
      %v617 = vld [vmem:[%s196 + $0x70] sm:$0xff]
      %v618 = vld [vmem:[%s196 + $0x78] sm:$0xff]
      %v619 = vld [vmem:[%s196 + $0x80] sm:$0x11]
      %s620 = scalar_lea.vmem %s1, 128
      %v621 = vld [vmem:[%s620] sm:$0xff]
      %v622 = vld [vmem:[%s620 + $0x8] sm:$0xff]
      %v623 = vld [vmem:[%s620 + $0x10] sm:$0xff]
      %v624 = vld [vmem:[%s620 + $0x18] sm:$0xff]
      %v625 = vld [vmem:[%s620 + $0x20] sm:$0xff]
      %v626 = vld [vmem:[%s620 + $0x28] sm:$0xff]
      %v627 = vld [vmem:[%s620 + $0x30] sm:$0xff]
      %v628 = vld [vmem:[%s620 + $0x38] sm:$0xff]
      %v629 = vld [vmem:[%s620 + $0x40] sm:$0xff]
      %v630 = vld [vmem:[%s620 + $0x48] sm:$0xff]
      %v631 = vld [vmem:[%s620 + $0x50] sm:$0xff]
      %v632 = vld [vmem:[%s620 + $0x58] sm:$0xff]
      %v633 = vld [vmem:[%s620 + $0x60] sm:$0xff]
      %v634 = vld [vmem:[%s620 + $0x68] sm:$0xff]
      %v635 = vld [vmem:[%s620 + $0x70] sm:$0xff]
      %v636 = vld [vmem:[%s620 + $0x78] sm:$0xff]
      %v653 = vunpack.c.l.b16 %v621
      %v654 = vunpack.c.h.b16 %v621
      %v655 = vunpack.c.l.b16 %v622
      %v656 = vunpack.c.h.b16 %v622
      %v657 = vunpack.c.l.b16 %v623
      %v658 = vunpack.c.h.b16 %v623
      %v659 = vunpack.c.l.b16 %v624
      %v660 = vunpack.c.h.b16 %v624
      %v661 = vunpack.c.l.b16 %v625
      %v662 = vunpack.c.h.b16 %v625
      %v663 = vunpack.c.l.b16 %v626
      %v664 = vunpack.c.h.b16 %v626
      %v665 = vunpack.c.l.b16 %v627
      %v666 = vunpack.c.h.b16 %v627
      %v667 = vunpack.c.l.b16 %v628
      %v668 = vunpack.c.h.b16 %v628
      %v669 = vunpack.c.l.b16 %v629
      %v670 = vunpack.c.h.b16 %v629
      %v671 = vunpack.c.l.b16 %v630
      %v672 = vunpack.c.h.b16 %v630
      %v673 = vunpack.c.l.b16 %v631
      %v674 = vunpack.c.h.b16 %v631
      %v675 = vunpack.c.l.b16 %v632
      %v676 = vunpack.c.h.b16 %v632
      %v677 = vunpack.c.l.b16 %v633
      %v678 = vunpack.c.h.b16 %v633
      %v679 = vunpack.c.l.b16 %v634
      %v680 = vunpack.c.h.b16 %v634
      %v681 = vunpack.c.l.b16 %v635
      %v682 = vunpack.c.h.b16 %v635
      %v683 = vunpack.c.l.b16 %v636
      %v684 = vunpack.c.h.b16 %v636
      %v685 = vpack.c.b16 %v655, %v653
      %v686 = vpack.c.b16 %v656, %v654
      %v687 = vpack.c.b16 %v659, %v657
      %v688 = vpack.c.b16 %v660, %v658
      %v689 = vpack.c.b16 %v663, %v661
      %v690 = vpack.c.b16 %v664, %v662
      %v691 = vpack.c.b16 %v667, %v665
      %v692 = vpack.c.b16 %v668, %v666
      %v693 = vpack.c.b16 %v671, %v669
      %v694 = vpack.c.b16 %v672, %v670
      %v695 = vpack.c.b16 %v675, %v673
      %v696 = vpack.c.b16 %v676, %v674
      %v697 = vpack.c.b16 %v679, %v677
      %v698 = vpack.c.b16 %v680, %v678
      %v699 = vpack.c.b16 %v683, %v681
      %v700 = vpack.c.b16 %v684, %v682
      %v726 = vunpack.c.l.b16 %v603
      %v727 = vunpack.c.h.b16 %v603
      %v728 = vunpack.c.l.b16 %v604
      %v729 = vunpack.c.h.b16 %v604
      %v730 = vunpack.c.l.b16 %v605
      %v731 = vunpack.c.h.b16 %v605
      %v732 = vunpack.c.l.b16 %v606
      %v733 = vunpack.c.h.b16 %v606
      %v734 = vunpack.c.l.b16 %v607
      %v735 = vunpack.c.h.b16 %v607
      %v736 = vunpack.c.l.b16 %v608
      %v737 = vunpack.c.h.b16 %v608
      %v738 = vunpack.c.l.b16 %v609
      %v739 = vunpack.c.h.b16 %v609
      %v740 = vunpack.c.l.b16 %v610
      %v741 = vunpack.c.h.b16 %v610
      %v742 = vunpack.c.l.b16 %v611
      %v743 = vunpack.c.h.b16 %v611
      %v744 = vunpack.c.l.b16 %v612
      %v745 = vunpack.c.h.b16 %v612
      %v746 = vunpack.c.l.b16 %v613
      %v747 = vunpack.c.h.b16 %v613
      %v748 = vunpack.c.l.b16 %v614
      %v749 = vunpack.c.h.b16 %v614
      %v750 = vunpack.c.l.b16 %v615
      %v751 = vunpack.c.h.b16 %v615
      %v752 = vunpack.c.l.b16 %v616
      %v753 = vunpack.c.h.b16 %v616
      %v754 = vunpack.c.l.b16 %v617
      %v755 = vunpack.c.h.b16 %v617
      %v756 = vunpack.c.l.b16 %v618
      %v757 = vunpack.c.h.b16 %v618
      %v758 = vunpack.c.l.b16 %v619
      %v759 = vunpack.c.h.b16 %v619
      %v760 = vpack.c.b16 %v728, %v726
      %v761 = vpack.c.b16 %v729, %v727
      %v762 = vpack.c.b16 %v732, %v730
      %v763 = vpack.c.b16 %v733, %v731
      %v764 = vpack.c.b16 %v736, %v734
      %v765 = vpack.c.b16 %v737, %v735
      %v766 = vpack.c.b16 %v740, %v738
      %v767 = vpack.c.b16 %v741, %v739
      %v768 = vpack.c.b16 %v744, %v742
      %v769 = vpack.c.b16 %v745, %v743
      %v770 = vpack.c.b16 %v748, %v746
      %v771 = vpack.c.b16 %v749, %v747
      %v772 = vpack.c.b16 %v752, %v750
      %v773 = vpack.c.b16 %v753, %v751
      %v774 = vpack.c.b16 %v756, %v754
      %v775 = vpack.c.b16 %v757, %v755
      %v776 = vpack.c.b16 %v758, %v758
      %v777 = vpack.c.b16 %v759, %v759
      %778 = vrot.lane.b32.xlu0 %v760, 127
      %v779 = vpop.permute.xlu0 %778
      %780 = vrot.lane.b32.xlu0 %v761, 127
      %v781 = vpop.permute.xlu0 %780
      %782 = vrot.lane.b32.xlu0 %v762, 127
      %v783 = vpop.permute.xlu0 %782
      %784 = vrot.lane.b32.xlu0 %v763, 127
      %v785 = vpop.permute.xlu0 %784
      %786 = vrot.lane.b32.xlu0 %v764, 127
      %v787 = vpop.permute.xlu0 %786
      %788 = vrot.lane.b32.xlu0 %v765, 127
      %v789 = vpop.permute.xlu0 %788
      %790 = vrot.lane.b32.xlu0 %v766, 127
      %v791 = vpop.permute.xlu0 %790
      %792 = vrot.lane.b32.xlu0 %v767, 127
      %v793 = vpop.permute.xlu0 %792
      %794 = vrot.lane.b32.xlu0 %v768, 127
      %v795 = vpop.permute.xlu0 %794
      %796 = vrot.lane.b32.xlu0 %v769, 127
      %v797 = vpop.permute.xlu0 %796
      %798 = vrot.lane.b32.xlu0 %v770, 127
      %v799 = vpop.permute.xlu0 %798
      %800 = vrot.lane.b32.xlu0 %v771, 127
      %v801 = vpop.permute.xlu0 %800
      %802 = vrot.lane.b32.xlu0 %v772, 127
      %v803 = vpop.permute.xlu0 %802
      %804 = vrot.lane.b32.xlu0 %v773, 127
      %v805 = vpop.permute.xlu0 %804
      %806 = vrot.lane.b32.xlu0 %v774, 127
      %v807 = vpop.permute.xlu0 %806
      %808 = vrot.lane.b32.xlu0 %v775, 127
      %v809 = vpop.permute.xlu0 %808
      %810 = vrot.lane.b32.xlu0 %v776, 127
      %v811 = vpop.permute.xlu0 %810
      %812 = vrot.lane.b32.xlu0 %v777, 127
      %v813 = vpop.permute.xlu0 %812
      %vm814 = vcmask 1039360
      %v815 = vsel %vm814, %v779, %v781
      %v816 = vsel %vm814, %v783, %v785
      %v817 = vsel %vm814, %v787, %v789
      %v818 = vsel %vm814, %v791, %v793
      %v819 = vsel %vm814, %v795, %v797
      %v820 = vsel %vm814, %v799, %v801
      %v821 = vsel %vm814, %v803, %v805
      %v822 = vsel %vm814, %v807, %v809
      %v823 = vsel %vm814, %v811, %v813
      %v833 = vsel %vm458, %v686, 0
      %v836 = vsel %vm458, %v688, 0
      %v839 = vsel %vm458, %v690, 0
      %v842 = vsel %vm458, %v692, 0
      %v845 = vsel %vm458, %v694, 0
      %v848 = vsel %vm458, %v696, 0
      %v851 = vsel %vm458, %v698, 0
      %v854 = vsel %vm458, %v700, 0
      %v857 = vand.u32 %v823, %v485
      %859 = vmatpush.bf16.msra.mxu0 %v822
      %860 = vmatpush.bf16.msra.mxu0 %v821
      %861 = vmatpush.bf16.msra.mxu0 %v820
      %862 = vmatpush.bf16.msra.mxu0 %v819
      %863 = vmatpush.bf16.msra.mxu0 %v818
      %864 = vmatpush.bf16.msra.mxu0 %v817
      %865 = vmatpush.bf16.msra.mxu0 %v816
      %866 = vmatpush.bf16.msra.mxu0 %v815
      %867 = vmatmul.bf16.gmra.mxu0 %v685
      %v868 = vpop.f32.mrf.mxu0
      %v869 = vadd.f32 0.0, %v868
      %v870 = vpop.f32.mrf.mxu0
      %v871 = vadd.f32 0.0, %v870
      %872 = vmatmul.bf16.gmra.mxu0 %v687
      %v873 = vpop.f32.mrf.mxu0
      %v874 = vadd.f32 0.0, %v873
      %v875 = vpop.f32.mrf.mxu0
      %v876 = vadd.f32 0.0, %v875
      %877 = vmatmul.bf16.gmra.mxu0 %v689
      %v878 = vpop.f32.mrf.mxu0
      %v879 = vadd.f32 0.0, %v878
      %v880 = vpop.f32.mrf.mxu0
      %v881 = vadd.f32 0.0, %v880
      %882 = vmatmul.bf16.gmra.mxu0 %v691
      %v883 = vpop.f32.mrf.mxu0
      %v884 = vadd.f32 0.0, %v883
      %v885 = vpop.f32.mrf.mxu0
      %v886 = vadd.f32 0.0, %v885
      %887 = vmatmul.bf16.gmra.mxu0 %v693
      %v888 = vpop.f32.mrf.mxu0
      %v889 = vadd.f32 0.0, %v888
      %v890 = vpop.f32.mrf.mxu0
      %v891 = vadd.f32 0.0, %v890
      %892 = vmatmul.bf16.gmra.mxu0 %v695
      %v893 = vpop.f32.mrf.mxu0
      %v894 = vadd.f32 0.0, %v893
      %v895 = vpop.f32.mrf.mxu0
      %v896 = vadd.f32 0.0, %v895
      %897 = vmatmul.bf16.gmra.mxu0 %v697
      %v898 = vpop.f32.mrf.mxu0
      %v899 = vadd.f32 0.0, %v898
      %v900 = vpop.f32.mrf.mxu0
      %v901 = vadd.f32 0.0, %v900
      %902 = vmatmul.bf16.gmra.mxu0 %v699
      %v903 = vpop.f32.mrf.mxu0
      %v904 = vadd.f32 0.0, %v903
      %v905 = vpop.f32.mrf.mxu0
      %v906 = vadd.f32 0.0, %v905
      %907 = vdwg.mxu0
      %908 = vmatpush.bf16.msra.mxu0 0
      %909 = vmatpush.bf16.msra.mxu0 0
      %910 = vmatpush.bf16.msra.mxu0 0
      %911 = vmatpush.bf16.msra.mxu0 0
      %912 = vmatpush.bf16.msra.mxu0 0
      %913 = vmatpush.bf16.msra.mxu0 0
      %914 = vmatpush.bf16.msra.mxu0 0
      %915 = vmatpush.bf16.msra.mxu0 %v857
      %916 = vmatmul.bf16.gmra.mxu0 %v833
      %v917 = vpop.f32.mrf.mxu0
      %v918 = vadd.f32 %v869, %v917
      %v919 = vpop.f32.mrf.mxu0
      %v920 = vadd.f32 %v871, %v919
      %921 = vmatmul.bf16.gmra.mxu0 %v836
      %v922 = vpop.f32.mrf.mxu0
      %v923 = vadd.f32 %v874, %v922
      %v924 = vpop.f32.mrf.mxu0
      %v925 = vadd.f32 %v876, %v924
      %926 = vmatmul.bf16.gmra.mxu0 %v839
      %v927 = vpop.f32.mrf.mxu0
      %v928 = vadd.f32 %v879, %v927
      %v929 = vpop.f32.mrf.mxu0
      %v930 = vadd.f32 %v881, %v929
      %931 = vmatmul.bf16.gmra.mxu0 %v842
      %v932 = vpop.f32.mrf.mxu0
      %v933 = vadd.f32 %v884, %v932
      %v934 = vpop.f32.mrf.mxu0
      %v935 = vadd.f32 %v886, %v934
      %936 = vmatmul.bf16.gmra.mxu0 %v845
      %v937 = vpop.f32.mrf.mxu0
      %v938 = vadd.f32 %v889, %v937
      %v939 = vpop.f32.mrf.mxu0
      %v940 = vadd.f32 %v891, %v939
      %941 = vmatmul.bf16.gmra.mxu0 %v848
      %v942 = vpop.f32.mrf.mxu0
      %v943 = vadd.f32 %v894, %v942
      %v944 = vpop.f32.mrf.mxu0
      %v945 = vadd.f32 %v896, %v944
      %946 = vmatmul.bf16.gmra.mxu0 %v851
      %v947 = vpop.f32.mrf.mxu0
      %v948 = vadd.f32 %v899, %v947
      %v949 = vpop.f32.mrf.mxu0
      %v950 = vadd.f32 %v901, %v949
      %951 = vmatmul.bf16.gmra.mxu0 %v854
      %v952 = vpop.f32.mrf.mxu0
      %v953 = vadd.f32 %v904, %v952
      %v954 = vpop.f32.mrf.mxu0
      %v955 = vadd.f32 %v906, %v954
      %956 = vdwg.mxu0
      %v957 = vadd.f32 %v587, %v918
      %v958 = vadd.f32 %v588, %v920
      %v959 = vadd.f32 %v589, %v923
      %v960 = vadd.f32 %v590, %v925
      %v961 = vadd.f32 %v591, %v928
      %v962 = vadd.f32 %v592, %v930
      %v963 = vadd.f32 %v593, %v933
      %v964 = vadd.f32 %v594, %v935
      %v965 = vadd.f32 %v595, %v938
      %v966 = vadd.f32 %v596, %v940
      %v967 = vadd.f32 %v597, %v943
      %v968 = vadd.f32 %v598, %v945
      %v969 = vadd.f32 %v599, %v948
      %v970 = vadd.f32 %v600, %v950
      %v971 = vadd.f32 %v601, %v953
      %v972 = vadd.f32 %v602, %v955
      %s973 = scalar_lea.vmem %s1, 256
      %v974 = vld [vmem:[%s973] sm:$0xff]
      %v975 = vld [vmem:[%s973 + $0x8] sm:$0xff]
      %v976 = vld [vmem:[%s973 + $0x10] sm:$0xff]
      %v977 = vld [vmem:[%s973 + $0x18] sm:$0xff]
      %v978 = vld [vmem:[%s973 + $0x20] sm:$0xff]
      %v979 = vld [vmem:[%s973 + $0x28] sm:$0xff]
      %v980 = vld [vmem:[%s973 + $0x30] sm:$0xff]
      %v981 = vld [vmem:[%s973 + $0x38] sm:$0xff]
      %v982 = vld [vmem:[%s973 + $0x40] sm:$0xff]
      %v983 = vld [vmem:[%s973 + $0x48] sm:$0xff]
      %v984 = vld [vmem:[%s973 + $0x50] sm:$0xff]
      %v985 = vld [vmem:[%s973 + $0x58] sm:$0xff]
      %v986 = vld [vmem:[%s973 + $0x60] sm:$0xff]
      %v987 = vld [vmem:[%s973 + $0x68] sm:$0xff]
      %v988 = vld [vmem:[%s973 + $0x70] sm:$0xff]
      %v989 = vld [vmem:[%s973 + $0x78] sm:$0xff]
      %v1006 = vunpack.c.l.b16 %v974
      %v1007 = vunpack.c.h.b16 %v974
      %v1008 = vunpack.c.l.b16 %v975
      %v1009 = vunpack.c.h.b16 %v975
      %v1010 = vunpack.c.l.b16 %v976
      %v1011 = vunpack.c.h.b16 %v976
      %v1012 = vunpack.c.l.b16 %v977
      %v1013 = vunpack.c.h.b16 %v977
      %v1014 = vunpack.c.l.b16 %v978
      %v1015 = vunpack.c.h.b16 %v978
      %v1016 = vunpack.c.l.b16 %v979
      %v1017 = vunpack.c.h.b16 %v979
      %v1018 = vunpack.c.l.b16 %v980
      %v1019 = vunpack.c.h.b16 %v980
      %v1020 = vunpack.c.l.b16 %v981
      %v1021 = vunpack.c.h.b16 %v981
      %v1022 = vunpack.c.l.b16 %v982
      %v1023 = vunpack.c.h.b16 %v982
      %v1024 = vunpack.c.l.b16 %v983
      %v1025 = vunpack.c.h.b16 %v983
      %v1026 = vunpack.c.l.b16 %v984
      %v1027 = vunpack.c.h.b16 %v984
      %v1028 = vunpack.c.l.b16 %v985
      %v1029 = vunpack.c.h.b16 %v985
      %v1030 = vunpack.c.l.b16 %v986
      %v1031 = vunpack.c.h.b16 %v986
      %v1032 = vunpack.c.l.b16 %v987
      %v1033 = vunpack.c.h.b16 %v987
      %v1034 = vunpack.c.l.b16 %v988
      %v1035 = vunpack.c.h.b16 %v988
      %v1036 = vunpack.c.l.b16 %v989
      %v1037 = vunpack.c.h.b16 %v989
      %v1038 = vpack.c.b16 %v1008, %v1006
      %v1039 = vpack.c.b16 %v1009, %v1007
      %v1040 = vpack.c.b16 %v1012, %v1010
      %v1041 = vpack.c.b16 %v1013, %v1011
      %v1042 = vpack.c.b16 %v1016, %v1014
      %v1043 = vpack.c.b16 %v1017, %v1015
      %v1044 = vpack.c.b16 %v1020, %v1018
      %v1045 = vpack.c.b16 %v1021, %v1019
      %v1046 = vpack.c.b16 %v1024, %v1022
      %v1047 = vpack.c.b16 %v1025, %v1023
      %v1048 = vpack.c.b16 %v1028, %v1026
      %v1049 = vpack.c.b16 %v1029, %v1027
      %v1050 = vpack.c.b16 %v1032, %v1030
      %v1051 = vpack.c.b16 %v1033, %v1031
      %v1052 = vpack.c.b16 %v1036, %v1034
      %v1053 = vpack.c.b16 %v1037, %v1035
      %1062 = vrot.lane.b32.xlu0 %v760, 126
      %v1063 = vpop.permute.xlu0 %1062
      %1064 = vrot.lane.b32.xlu0 %v761, 126
      %v1065 = vpop.permute.xlu0 %1064
      %1066 = vrot.lane.b32.xlu0 %v762, 126
      %v1067 = vpop.permute.xlu0 %1066
      %1068 = vrot.lane.b32.xlu0 %v763, 126
      %v1069 = vpop.permute.xlu0 %1068
      %1070 = vrot.lane.b32.xlu0 %v764, 126
      %v1071 = vpop.permute.xlu0 %1070
      %1072 = vrot.lane.b32.xlu0 %v765, 126
      %v1073 = vpop.permute.xlu0 %1072
      %1074 = vrot.lane.b32.xlu0 %v766, 126
      %v1075 = vpop.permute.xlu0 %1074
      %1076 = vrot.lane.b32.xlu0 %v767, 126
      %v1077 = vpop.permute.xlu0 %1076
      %1078 = vrot.lane.b32.xlu0 %v768, 126
      %v1079 = vpop.permute.xlu0 %1078
      %1080 = vrot.lane.b32.xlu0 %v769, 126
      %v1081 = vpop.permute.xlu0 %1080
      %1082 = vrot.lane.b32.xlu0 %v770, 126
      %v1083 = vpop.permute.xlu0 %1082
      %1084 = vrot.lane.b32.xlu0 %v771, 126
      %v1085 = vpop.permute.xlu0 %1084
      %1086 = vrot.lane.b32.xlu0 %v772, 126
      %v1087 = vpop.permute.xlu0 %1086
      %1088 = vrot.lane.b32.xlu0 %v773, 126
      %v1089 = vpop.permute.xlu0 %1088
      %1090 = vrot.lane.b32.xlu0 %v774, 126
      %v1091 = vpop.permute.xlu0 %1090
      %1092 = vrot.lane.b32.xlu0 %v775, 126
      %v1093 = vpop.permute.xlu0 %1092
      %1094 = vrot.lane.b32.xlu0 %v776, 126
      %v1095 = vpop.permute.xlu0 %1094
      %1096 = vrot.lane.b32.xlu0 %v777, 126
      %v1097 = vpop.permute.xlu0 %1096
      %vm1098 = vcmask 1031168
      %v1099 = vsel %vm1098, %v1063, %v1065
      %v1100 = vsel %vm1098, %v1067, %v1069
      %v1101 = vsel %vm1098, %v1071, %v1073
      %v1102 = vsel %vm1098, %v1075, %v1077
      %v1103 = vsel %vm1098, %v1079, %v1081
      %v1104 = vsel %vm1098, %v1083, %v1085
      %v1105 = vsel %vm1098, %v1087, %v1089
      %v1106 = vsel %vm1098, %v1091, %v1093
      %v1107 = vsel %vm1098, %v1095, %v1097
      %v1117 = vsel %vm458, %v1039, 0
      %v1120 = vsel %vm458, %v1041, 0
      %v1123 = vsel %vm458, %v1043, 0
      %v1126 = vsel %vm458, %v1045, 0
      %v1129 = vsel %vm458, %v1047, 0
      %v1132 = vsel %vm458, %v1049, 0
      %v1135 = vsel %vm458, %v1051, 0
      %v1138 = vsel %vm458, %v1053, 0
      %v1141 = vand.u32 %v1107, %v485
      %1143 = vmatpush.bf16.msra.mxu0 %v1106
      %1144 = vmatpush.bf16.msra.mxu0 %v1105
      %1145 = vmatpush.bf16.msra.mxu0 %v1104
      %1146 = vmatpush.bf16.msra.mxu0 %v1103
      %1147 = vmatpush.bf16.msra.mxu0 %v1102
      %1148 = vmatpush.bf16.msra.mxu0 %v1101
      %1149 = vmatpush.bf16.msra.mxu0 %v1100
      %1150 = vmatpush.bf16.msra.mxu0 %v1099
      %1151 = vmatmul.bf16.gmra.mxu0 %v1038
      %v1152 = vpop.f32.mrf.mxu0
      %v1153 = vadd.f32 0.0, %v1152
      %v1154 = vpop.f32.mrf.mxu0
      %v1155 = vadd.f32 0.0, %v1154
      %1156 = vmatmul.bf16.gmra.mxu0 %v1040
      %v1157 = vpop.f32.mrf.mxu0
      %v1158 = vadd.f32 0.0, %v1157
      %v1159 = vpop.f32.mrf.mxu0
      %v1160 = vadd.f32 0.0, %v1159
      %1161 = vmatmul.bf16.gmra.mxu0 %v1042
      %v1162 = vpop.f32.mrf.mxu0
      %v1163 = vadd.f32 0.0, %v1162
      %v1164 = vpop.f32.mrf.mxu0
      %v1165 = vadd.f32 0.0, %v1164
      %1166 = vmatmul.bf16.gmra.mxu0 %v1044
      %v1167 = vpop.f32.mrf.mxu0
      %v1168 = vadd.f32 0.0, %v1167
      %v1169 = vpop.f32.mrf.mxu0
      %v1170 = vadd.f32 0.0, %v1169
      %1171 = vmatmul.bf16.gmra.mxu0 %v1046
      %v1172 = vpop.f32.mrf.mxu0
      %v1173 = vadd.f32 0.0, %v1172
      %v1174 = vpop.f32.mrf.mxu0
      %v1175 = vadd.f32 0.0, %v1174
      %1176 = vmatmul.bf16.gmra.mxu0 %v1048
      %v1177 = vpop.f32.mrf.mxu0
      %v1178 = vadd.f32 0.0, %v1177
      %v1179 = vpop.f32.mrf.mxu0
      %v1180 = vadd.f32 0.0, %v1179
      %1181 = vmatmul.bf16.gmra.mxu0 %v1050
      %v1182 = vpop.f32.mrf.mxu0
      %v1183 = vadd.f32 0.0, %v1182
      %v1184 = vpop.f32.mrf.mxu0
      %v1185 = vadd.f32 0.0, %v1184
      %1186 = vmatmul.bf16.gmra.mxu0 %v1052
      %v1187 = vpop.f32.mrf.mxu0
      %v1188 = vadd.f32 0.0, %v1187
      %v1189 = vpop.f32.mrf.mxu0
      %v1190 = vadd.f32 0.0, %v1189
      %1191 = vdwg.mxu0
      %1192 = vmatpush.bf16.msra.mxu0 0
      %1193 = vmatpush.bf16.msra.mxu0 0
      %1194 = vmatpush.bf16.msra.mxu0 0
      %1195 = vmatpush.bf16.msra.mxu0 0
      %1196 = vmatpush.bf16.msra.mxu0 0
      %1197 = vmatpush.bf16.msra.mxu0 0
      %1198 = vmatpush.bf16.msra.mxu0 0
      %1199 = vmatpush.bf16.msra.mxu0 %v1141
      %1200 = vmatmul.bf16.gmra.mxu0 %v1117
      %v1201 = vpop.f32.mrf.mxu0
      %v1202 = vadd.f32 %v1153, %v1201
      %v1203 = vpop.f32.mrf.mxu0
      %v1204 = vadd.f32 %v1155, %v1203
      %1205 = vmatmul.bf16.gmra.mxu0 %v1120
      %v1206 = vpop.f32.mrf.mxu0
      %v1207 = vadd.f32 %v1158, %v1206
      %v1208 = vpop.f32.mrf.mxu0
      %v1209 = vadd.f32 %v1160, %v1208
      %1210 = vmatmul.bf16.gmra.mxu0 %v1123
      %v1211 = vpop.f32.mrf.mxu0
      %v1212 = vadd.f32 %v1163, %v1211
      %v1213 = vpop.f32.mrf.mxu0
      %v1214 = vadd.f32 %v1165, %v1213
      %1215 = vmatmul.bf16.gmra.mxu0 %v1126
      %v1216 = vpop.f32.mrf.mxu0
      %v1217 = vadd.f32 %v1168, %v1216
      %v1218 = vpop.f32.mrf.mxu0
      %v1219 = vadd.f32 %v1170, %v1218
      %1220 = vmatmul.bf16.gmra.mxu0 %v1129
      %v1221 = vpop.f32.mrf.mxu0
      %v1222 = vadd.f32 %v1173, %v1221
      %v1223 = vpop.f32.mrf.mxu0
      %v1224 = vadd.f32 %v1175, %v1223
      %1225 = vmatmul.bf16.gmra.mxu0 %v1132
      %v1226 = vpop.f32.mrf.mxu0
      %v1227 = vadd.f32 %v1178, %v1226
      %v1228 = vpop.f32.mrf.mxu0
      %v1229 = vadd.f32 %v1180, %v1228
      %1230 = vmatmul.bf16.gmra.mxu0 %v1135
      %v1231 = vpop.f32.mrf.mxu0
      %v1232 = vadd.f32 %v1183, %v1231
      %v1233 = vpop.f32.mrf.mxu0
      %v1234 = vadd.f32 %v1185, %v1233
      %1235 = vmatmul.bf16.gmra.mxu0 %v1138
      %v1236 = vpop.f32.mrf.mxu0
      %v1237 = vadd.f32 %v1188, %v1236
      %v1238 = vpop.f32.mrf.mxu0
      %v1239 = vadd.f32 %v1190, %v1238
      %1240 = vdwg.mxu0
      %v1241 = vadd.f32 %v957, %v1202
      %v1242 = vadd.f32 %v958, %v1204
      %v1243 = vadd.f32 %v959, %v1207
      %v1244 = vadd.f32 %v960, %v1209
      %v1245 = vadd.f32 %v961, %v1212
      %v1246 = vadd.f32 %v962, %v1214
      %v1247 = vadd.f32 %v963, %v1217
      %v1248 = vadd.f32 %v964, %v1219
      %v1249 = vadd.f32 %v965, %v1222
      %v1250 = vadd.f32 %v966, %v1224
      %v1251 = vadd.f32 %v967, %v1227
      %v1252 = vadd.f32 %v968, %v1229
      %v1253 = vadd.f32 %v969, %v1232
      %v1254 = vadd.f32 %v970, %v1234
      %v1255 = vadd.f32 %v971, %v1237
      %v1256 = vadd.f32 %v972, %v1239
      %v1257 = vmax.f32 %v1241, 0.0
      %v1258 = vmax.f32 %v1242, 0.0
      %v1259 = vmax.f32 %v1243, 0.0
      %v1260 = vmax.f32 %v1244, 0.0
      %v1261 = vmax.f32 %v1245, 0.0
      %v1262 = vmax.f32 %v1246, 0.0
      %v1263 = vmax.f32 %v1247, 0.0
      %v1264 = vmax.f32 %v1248, 0.0
      %v1265 = vmax.f32 %v1249, 0.0
      %v1266 = vmax.f32 %v1250, 0.0
      %v1267 = vmax.f32 %v1251, 0.0
      %v1268 = vmax.f32 %v1252, 0.0
      %v1269 = vmax.f32 %v1253, 0.0
      %v1270 = vmax.f32 %v1254, 0.0
      %v1271 = vmax.f32 %v1255, 0.0
      %v1272 = vmax.f32 %v1256, 0.0
      %1273 = vst [vmem:[%s204] sm:$0xff] %v1257
      %1274 = vst [vmem:[%s204 + $0x8] sm:$0xff] %v1258
      %1275 = vst [vmem:[%s204 + $0x10] sm:$0xff] %v1259
      %1276 = vst [vmem:[%s204 + $0x18] sm:$0xff] %v1260
      %1277 = vst [vmem:[%s204 + $0x20] sm:$0xff] %v1261
      %1278 = vst [vmem:[%s204 + $0x28] sm:$0xff] %v1262
      %1279 = vst [vmem:[%s204 + $0x30] sm:$0xff] %v1263
      %1280 = vst [vmem:[%s204 + $0x38] sm:$0xff] %v1264
      %1281 = vst [vmem:[%s204 + $0x40] sm:$0xff] %v1265
      %1282 = vst [vmem:[%s204 + $0x48] sm:$0xff] %v1266
      %1283 = vst [vmem:[%s204 + $0x50] sm:$0xff] %v1267
      %1284 = vst [vmem:[%s204 + $0x58] sm:$0xff] %v1268
      %1285 = vst [vmem:[%s204 + $0x60] sm:$0xff] %v1269
      %1286 = vst [vmem:[%s204 + $0x68] sm:$0xff] %v1270
      %1287 = vst [vmem:[%s204 + $0x70] sm:$0xff] %v1271
      %1288 = vst [vmem:[%s204 + $0x78] sm:$0xff] %v1272
      %p1289 = scmp.lt.s32.totalorder %s18, 1
      %s1290 = scalar_select %p1289, %s18, 1
      %p1291 = scmp.lt.s32.totalorder %s19, 0
      %s1292 = scalar_select %p1291, %s19, 0
      %s1293 = smul.addr %s1290, 16
      %s1294 = sadd.s32 %s1292, %s1293
      %s1295 = smul.addr %s1294, 8
      %s1296 = scalar_lea.vmem %s3, %s1295
      // Predicated region
      $region33: #{mobileone_block.1} parent=31 // pred_check
        %p1297 = pneg %p116
      $region34: #{mobileone_block.1} parent=31 // pred_check_branch
        %1299 = sbr.rel (%p1297) target = $region36
      $region35: #{mobileone_block.1} parent=31 // pred_region
        _
      $region36: #{mobileone_block.1} parent=31 // pred_fallthru
        _
    $region32: #{mobileone_block.1} parent=5 // pred_fallthru
      _
    %p1300 = scmp.le.s32.totalorder 2, %s9
    // Predicated region
    $region37: #{mobileone_block.1} parent=5 // pred_check
      %p1301 = pneg %p1300
    $region38: #{mobileone_block.1} parent=5 // pred_check_branch
      %1303 = sbr.rel (%p1301) target = $region40
    $region39: #{mobileone_block.1} parent=5 // pred_region
      %s1304 = ssub.s32 %s9, 2
      // Predicated region
      $region41: #{mobileone_block.1} parent=39 // pred_check
        %p1305 = pneg %p122
      $region42: #{mobileone_block.1} parent=39 // pred_check_branch
        %1307 = sbr.rel (%p1305) target = $region44
      $region43: #{mobileone_block.1} parent=39 // pred_region
        %p1308 = scmp.lt.s32.totalorder %s20, 1
        %s1309 = scalar_select %p1308, %s20, 1
        %p1310 = scmp.lt.s32.totalorder %s21, 0
        %s1311 = scalar_select %p1310, %s21, 0
        %s1312 = smul.addr %s1309, 16
        %s1313 = sadd.s32 %s1311, %s1312
        %s1314 = smul.addr %s1313, 8
        %s1315 = scalar_lea.vmem %s3, %s1314
      $region44: #{mobileone_block.1} parent=39 // pred_fallthru
        _
    $region40: #{mobileone_block.1} parent=5 // pred_fallthru
      _
  $region6: #{mobileone_block.1} parent=0 // loop_footer
    %s13 = sadd.s32 1, %s9
  $region7: #{mobileone_block.1} parent=0 // loop_footer_branch
    %8 = sbr.rel target = $region3
  $region8: #{mobileone_block.1} parent=0 // loop_exit
    _

</llo_original>
